<compile_context>
chip_gen: v5e
topology: v5e:2x2
jax: 0.10.0
libtpu: 0.0.40
codegen_flags: <defaults>
</compile_context>

<pallas_src>
import jax
import jax.numpy as jnp
from jax.experimental import pallas as pl
from jax.experimental.pallas import tpu as pltpu

# ----- module hyper-parameters ---------------------------------------------
WINDOW_SIZE = 32
HIDDEN = 32
OUT_RANGE = (10, 70)                        # inclusive, as in the PyTorch module
OUT_DIM = OUT_RANGE[1] - OUT_RANGE[0] + 1   # 61
PAD_LEFT = OUT_RANGE[0]                     # 10
PAD_RIGHT = 88 - OUT_RANGE[1]               # 18
TOTAL_OUT = PAD_LEFT + OUT_DIM + PAD_RIGHT  # 89 (piano keys 0..88)

TILE_N_MAX = 8192                           # rows per grid step (multiple of 8)
VMEM_LIMIT_BYTES = 32 * 1024 * 1024         # portable to v5e (16 MiB default) and v7x


def _freq_to_note_kernel(x_ref, w1_ref, b1_ref, w2p_ref, b2p_ref, mask_ref, o_ref):
    # linear1 + ReLU  (MXU matmul, f32 accumulate; bias add + relu on VPU)
    h = jnp.dot(x_ref[...], w1_ref[...], preferred_element_type=jnp.float32)
    h = jnp.maximum(h + b1_ref[...], 0.0)
    # linear2 — W2/b2 zero-padded to TOTAL_OUT columns.
    y = jnp.dot(h, w2p_ref[...], preferred_element_type=jnp.float32) + b2p_ref[...]
    # sigmoid (exp routed to EUP); explicit {0,1} mask zeroes the pad key columns
    # exactly, without relying on overflow semantics.  Single full-width store.
    s = 1.0 / (1.0 + jnp.exp(-y))
    o_ref[...] = (s * mask_ref[...]).astype(o_ref.dtype)


def _pad_linear2(w2, b2):
    """Fold F.pad(..., (PAD_LEFT, PAD_RIGHT)) into linear2's params + a lane mask."""
    w2p = jnp.zeros((HIDDEN, TOTAL_OUT), jnp.float32)
    w2p = w2p.at[:, PAD_LEFT:PAD_LEFT + OUT_DIM].set(w2)
    b2p = jnp.zeros((1, TOTAL_OUT), jnp.float32)
    b2p = b2p.at[:, PAD_LEFT:PAD_LEFT + OUT_DIM].set(b2)
    mask = jnp.zeros((1, TOTAL_OUT), jnp.float32)
    mask = mask.at[:, PAD_LEFT:PAD_LEFT + OUT_DIM].set(1.0)
    return w2p, b2p, mask


def _round_up8(v):
    return max(8, ((v + 7) // 8) * 8)


def _choose_tile_n(n):
    """Pick a row-tile: big (amortize per-step overhead), multiple of 8, and
    yielding >= 2 balanced grid steps so both v7x TensorCores get work."""
    n8 = _round_up8(n)
    if n8 <= 8:
        return 8
    half = _round_up8(pl.cdiv(n8, 2))            # guarantee >= 2 grid steps
    tile_n = min(TILE_N_MAX, half)
    steps = pl.cdiv(n8, tile_n)
    if steps > 1 and steps % 2 == 1:             # prefer an even step count
        steps += 1
        tile_n = _round_up8(pl.cdiv(n8, steps))
    return tile_n


def freq_to_note(x, w1, b1, w2, b2):
    """x: (..., WINDOW_SIZE) float32 -> (..., 89) float32."""
    lead = x.shape[:-1]
    x2d = x.reshape(-1, WINDOW_SIZE)
    n = x2d.shape[0]

    w2p, b2p, mask = _pad_linear2(w2, b2)

    tile_n = _choose_tile_n(n)
    grid = (pl.cdiv(n, tile_n),)

    cost = pl.CostEstimate(
        flops=2 * n * (WINDOW_SIZE * HIDDEN + HIDDEN * TOTAL_OUT),
        transcendentals=n * TOTAL_OUT,
        bytes_accessed=4 * n * (WINDOW_SIZE + TOTAL_OUT)
        + 4 * (WINDOW_SIZE * HIDDEN + HIDDEN + HIDDEN * TOTAL_OUT + 2 * TOTAL_OUT),
    )

    out2d = pl.pallas_call(
        _freq_to_note_kernel,
        out_shape=jax.ShapeDtypeStruct((n, TOTAL_OUT), jnp.float32),
        grid=grid,
        in_specs=[
            pl.BlockSpec((tile_n, WINDOW_SIZE), lambda i: (i, 0)),   # x rows
            pl.BlockSpec((WINDOW_SIZE, HIDDEN), lambda i: (0, 0)),   # W1 (resident)
            pl.BlockSpec((1, HIDDEN), lambda i: (0, 0)),             # b1 (resident)
            pl.BlockSpec((HIDDEN, TOTAL_OUT), lambda i: (0, 0)),     # W2 padded
            pl.BlockSpec((1, TOTAL_OUT), lambda i: (0, 0)),          # b2 padded
            pl.BlockSpec((1, TOTAL_OUT), lambda i: (0, 0)),          # pad-column mask
        ],
        out_specs=pl.BlockSpec((tile_n, TOTAL_OUT), lambda i: (i, 0)),
        compiler_params=pltpu.CompilerParams(
            dimension_semantics=("parallel",),
            vmem_limit_bytes=VMEM_LIMIT_BYTES,
        ),
        cost_estimate=cost,
    )(x2d, w1, b1, w2p, b2p, mask)

    return out2d.reshape(*lead, TOTAL_OUT)


def init_params(key):
    """Deterministic init matching nn.Linear shapes (weights stored transposed)."""
    k1, k2, k3, k4 = jax.random.split(key, 4)
    lim1 = 1.0 / (WINDOW_SIZE ** 0.5)
    lim2 = 1.0 / (HIDDEN ** 0.5)
    w1 = jax.random.uniform(k1, (WINDOW_SIZE, HIDDEN), jnp.float32, -lim1, lim1)
    b1 = jax.random.uniform(k2, (1, HIDDEN), jnp.float32, -lim1, lim1)
    w2 = jax.random.uniform(k3, (HIDDEN, OUT_DIM), jnp.float32, -lim2, lim2)
    b2 = jax.random.uniform(k4, (1, OUT_DIM), jnp.float32, -lim2, lim2)
    return w1, b1, w2, b2


if __name__ == "__main__":
    key = jax.random.PRNGKey(0)
    kx, kp = jax.random.split(key)

    batch, seq = 2, 8
    x = jax.random.normal(kx, (batch, seq, WINDOW_SIZE), jnp.float32)
    w1, b1, w2, b2 = init_params(kp)

    out = freq_to_note(x, w1, b1, w2, b2)
    out = jax.block_until_ready(out)

    # reference check in plain JAX (mirrors the PyTorch forward)
    h_ref = jnp.maximum(x @ w1 + b1[0], 0.0)
    y_ref = jax.nn.sigmoid(h_ref @ w2 + b2[0])
    ref = jnp.pad(y_ref, ((0, 0), (0, 0), (PAD_LEFT, PAD_RIGHT)))
    assert out.shape == (batch, seq, TOTAL_OUT)
    assert jnp.allclose(out, ref, atol=1e-5), "mismatch vs reference"
    # padded key columns must be exactly zero, as F.pad produces
    assert jnp.all(out[..., :PAD_LEFT] == 0.0)
    assert jnp.all(out[..., PAD_LEFT + OUT_DIM:] == 0.0)

    print("KERNEL_OK")
</pallas_src>

<mosaic_0001>
module attributes {stable_mosaic.version = 11 : i64} {
  func.func @_freq_to_note_kernel(%arg0: i32, %arg1: memref<8x32xf32, #tpu.memory_space<vmem>>, %arg2: memref<32x32xf32, #tpu.memory_space<vmem>>, %arg3: memref<1x32xf32, #tpu.memory_space<vmem>>, %arg4: memref<32x89xf32, #tpu.memory_space<vmem>>, %arg5: memref<1x89xf32, #tpu.memory_space<vmem>>, %arg6: memref<1x89xf32, #tpu.memory_space<vmem>>, %arg7: memref<8x89xf32, #tpu.memory_space<vmem>>) attributes {dimension_semantics = [#tpu.dimension_semantics<parallel>], iteration_bounds = array<i64: 2>, scalar_prefetch = 0 : i64, scratch_operands = 0 : i64, tpu.core_type = #tpu.core_type<tc>, window_params = [{transform_indices = @transform_0, window_bounds = array<i64: 8, 32>}, {pipeline_mode = #tpu.pipeline_mode<synchronous>, transform_indices = @transform_1, window_bounds = array<i64: 32, 32>}, {pipeline_mode = #tpu.pipeline_mode<synchronous>, transform_indices = @transform_2, window_bounds = array<i64: 1, 32>}, {pipeline_mode = #tpu.pipeline_mode<synchronous>, transform_indices = @transform_3, window_bounds = array<i64: 32, 89>}, {pipeline_mode = #tpu.pipeline_mode<synchronous>, transform_indices = @transform_4, window_bounds = array<i64: 1, 89>}, {pipeline_mode = #tpu.pipeline_mode<synchronous>, transform_indices = @transform_5, window_bounds = array<i64: 1, 89>}, {transform_indices = @transform_6, window_bounds = array<i64: 8, 89>}]} {
    %c0 = arith.constant 0 : index
    %c0_0 = arith.constant 0 : index
    %0 = vector.load %arg1[%c0, %c0_0] : memref<8x32xf32, #tpu.memory_space<vmem>>, vector<8x32xf32>
    %c0_1 = arith.constant 0 : index
    %c0_2 = arith.constant 0 : index
    %1 = vector.load %arg2[%c0_1, %c0_2] : memref<32x32xf32, #tpu.memory_space<vmem>>, vector<32x32xf32>
    %cst = arith.constant dense<0.000000e+00> : vector<8x32xf32>
    %2 = tpu.matmul %0, %1, %cst {dimension_numbers = #tpu.dot_dimension_numbers<[1], [0], [0], [1], [0, 0, 1, 1], [], []>} : vector<8x32xf32>, vector<32x32xf32>, vector<8x32xf32> -> vector<8x32xf32>
    %c0_3 = arith.constant 0 : index
    %c0_4 = arith.constant 0 : index
    %3 = vector.load %arg3[%c0_3, %c0_4] : memref<1x32xf32, #tpu.memory_space<vmem>>, vector<1x32xf32>
    %4 = vector.broadcast %3 : vector<1x32xf32> to vector<8x32xf32>
    %5 = arith.addf %2, %4 : vector<8x32xf32>
    %cst_5 = arith.constant 0.000000e+00 : f32
    %6 = vector.broadcast %cst_5 : f32 to vector<8x32xf32>
    %7 = arith.maximumf %5, %6 : vector<8x32xf32>
    %c0_6 = arith.constant 0 : index
    %c0_7 = arith.constant 0 : index
    %8 = vector.load %arg4[%c0_6, %c0_7] : memref<32x89xf32, #tpu.memory_space<vmem>>, vector<32x89xf32>
    %cst_8 = arith.constant dense<0.000000e+00> : vector<8x89xf32>
    %9 = tpu.matmul %7, %8, %cst_8 {dimension_numbers = #tpu.dot_dimension_numbers<[1], [0], [0], [1], [0, 0, 1, 1], [], []>} : vector<8x32xf32>, vector<32x89xf32>, vector<8x89xf32> -> vector<8x89xf32>
    %c0_9 = arith.constant 0 : index
    %c0_10 = arith.constant 0 : index
    %10 = vector.load %arg5[%c0_9, %c0_10] : memref<1x89xf32, #tpu.memory_space<vmem>>, vector<1x89xf32>
    %11 = vector.broadcast %10 : vector<1x89xf32> to vector<8x89xf32>
    %12 = arith.addf %9, %11 : vector<8x89xf32>
    %cst_11 = arith.constant 0.000000e+00 : f32
    %13 = vector.broadcast %cst_11 : f32 to vector<8x89xf32>
    %14 = arith.subf %13, %12 : vector<8x89xf32>
    %15 = math.exp %14 : vector<8x89xf32>
    %cst_12 = arith.constant 1.000000e+00 : f32
    %16 = vector.broadcast %cst_12 : f32 to vector<8x89xf32>
    %17 = arith.addf %16, %15 : vector<8x89xf32>
    %cst_13 = arith.constant 1.000000e+00 : f32
    %18 = vector.broadcast %cst_13 : f32 to vector<8x89xf32>
    %19 = arith.divf %18, %17 : vector<8x89xf32>
    %c0_14 = arith.constant 0 : index
    %c0_15 = arith.constant 0 : index
    %20 = vector.load %arg6[%c0_14, %c0_15] : memref<1x89xf32, #tpu.memory_space<vmem>>, vector<1x89xf32>
    %21 = vector.broadcast %20 : vector<1x89xf32> to vector<8x89xf32>
    %22 = arith.mulf %19, %21 : vector<8x89xf32>
    %c0_16 = arith.constant 0 : index
    %c0_17 = arith.constant 0 : index
    %23 = vector.load %arg7[%c0_16, %c0_17] : memref<8x89xf32, #tpu.memory_space<vmem>>, vector<8x89xf32>
    tpu.vector_store %arg7[%c0_16, %c0_17], %22 {strides = array<i32>} : memref<8x89xf32, #tpu.memory_space<vmem>>, vector<8x89xf32>,
    return
  }
  func.func @transform_0(%arg0: i32) -> (i32, i32) {
    %c0_i32 = arith.constant 0 : i32
    %c0_i32_0 = arith.constant 0 : i32
    return %arg0, %c0_i32 : i32, i32
  }
  func.func @transform_1(%arg0: i32) -> (i32, i32) {
    %c0_i32 = arith.constant 0 : i32
    %c0_i32_0 = arith.constant 0 : i32
    %c0_i32_1 = arith.constant 0 : i32
    return %c0_i32, %c0_i32_0 : i32, i32
  }
  func.func @transform_2(%arg0: i32) -> (i32, i32) {
    %c0_i32 = arith.constant 0 : i32
    %c0_i32_0 = arith.constant 0 : i32
    %c0_i32_1 = arith.constant 0 : i32
    return %c0_i32, %c0_i32_0 : i32, i32
  }
  func.func @transform_3(%arg0: i32) -> (i32, i32) {
    %c0_i32 = arith.constant 0 : i32
    %c0_i32_0 = arith.constant 0 : i32
    %c0_i32_1 = arith.constant 0 : i32
    return %c0_i32, %c0_i32_0 : i32, i32
  }
  func.func @transform_4(%arg0: i32) -> (i32, i32) {
    %c0_i32 = arith.constant 0 : i32
    %c0_i32_0 = arith.constant 0 : i32
    %c0_i32_1 = arith.constant 0 : i32
    return %c0_i32, %c0_i32_0 : i32, i32
  }
  func.func @transform_5(%arg0: i32) -> (i32, i32) {
    %c0_i32 = arith.constant 0 : i32
    %c0_i32_0 = arith.constant 0 : i32
    %c0_i32_1 = arith.constant 0 : i32
    return %c0_i32, %c0_i32_0 : i32, i32
  }
  func.func @transform_6(%arg0: i32) -> (i32, i32) {
    %c0_i32 = arith.constant 0 : i32
    %c0_i32_0 = arith.constant 0 : i32
    return %arg0, %c0_i32 : i32, i32
  }
}

</mosaic_0001>

<llo_original>
// kernel: tpu_custom_call.1
$region0: #{tpu_custom_call.1}
  #allocation0 [shape = 'u32[]', space=smem, size = 0x4, offset = 0x4, fixed_abs, tag = 'smem constant byte address 0x4 - core index']
  #allocation1 [shape = 'u32[72,128]{1,0:T(1,128)}', space=vmem, size = 0x9000, scoped, tag = 'internal scratch']
  %s0 = inlined_call_operand.hbm [shape: f32[16,32], index: 0, kind: input, shape index: {}]
  %s1 = inlined_call_operand.hbm [shape: f32[32,32], index: 1, kind: input, shape index: {}]
  %s2 = inlined_call_operand.vmem [shape: f32[1,32], index: 2, kind: input, shape index: {}]
  %s3 = inlined_call_operand.hbm [shape: f32[32,89], index: 3, kind: input, shape index: {}]
  %s4 = inlined_call_operand.vmem [shape: f32[1,89], index: 4, kind: input, shape index: {}]
  %s5 = inlined_call_operand.vmem [shape: f32[1,89], index: 5, kind: input, shape index: {}]
  %s6 = inlined_call_operand.hbm [shape: f32[16,89], index: 6, kind: output, shape index: {}]
  %s7 = sld [smem:[#allocation0]]
  $region69: #{tpu_custom_call.1} parent=0
    _
  %s9 = ssub.s32 1, %s7
  %s10 = scalar_select 0, %s9, %s7
  $region1: #{tpu_custom_call.1} parent=0
    #allocation2 [shape = 'u8[8192]{0}', space=vmem, size = 0x2000, scoped, tag = 'input window, operand 0']
    #allocation3 [shape = 's32[2]{0}', space=sflag, size = 0x8, scoped, tag = 'scoped memory for tpu_custom_call.1']
    #allocation4 [shape = 's32[2]{0}', space=sflag, size = 0x8, scoped, tag = 'scoped memory for tpu_custom_call.1']
    #allocation5 [shape = 'u8[16384]{0}', space=vmem, size = 0x4000, scoped, tag = 'input window, operand 1, single buffered']
    #allocation6 [shape = 's32[1]{0}', space=sflag, size = 0x4, scoped, tag = 'scoped memory for tpu_custom_call.1']
    #allocation7 [shape = 'u8[16384]{0}', space=vmem, size = 0x4000, scoped, tag = 'input window, operand 3, single buffered']
    #allocation8 [shape = 'u8[8192]{0}', space=vmem, size = 0x2000, scoped, tag = 'output window, operand 0']
    %11 = vsyncpa [#allocation3], 0
    %s12 = scalar_lea.sflag [#allocation3], 1
    %13 = vsyncpa %s12, 0
    %14 = vsyncpa [#allocation6], 0
    %15 = vsyncpa [#allocation4], 0
    %s16 = scalar_lea.sflag [#allocation4], 1
    %17 = vsyncpa %s16, 0
    loop: start=0, step=1, limit=4
    $region2: #{tpu_custom_call.1} parent=1 // loop_pre_header
      _
    $region3: #{tpu_custom_call.1} parent=1 // loop_header
      %s19 = sphi 0, %s23
      %p20 = scmp.ge.s32.totalorder %s19, 4
      %s29 = sphi 0, %s31
      %s32 = sphi 0, %s29
      %s33 = sphi 0, %s32
      %s49 = sphi 0, %s33
      %s53 = sphi 0, %s53
      %s55 = sphi 0, %s53
      %s56 = sphi 0, %s55
      %s70 = sphi 0, %s56
      %s74 = sphi 0, %s74
      %s76 = sphi 0, %s74
      %s77 = sphi 0, %s76
      %s91 = sphi 0, %s77
      %s95 = sphi 0, %s95
      %s97 = sphi 0, %s95
      %s98 = sphi 0, %s97
      %s112 = sphi 0, %s98
      %s116 = sphi 0, %s116
      %s118 = sphi 0, %s116
      %s119 = sphi 0, %s118
      %s133 = sphi 0, %s119
      %s137 = sphi 0, %s137
      %s139 = sphi 0, %s137
      %s140 = sphi 0, %s139
      %s154 = sphi 0, %s140
      %s160 = sphi 0, %s162
      %s163 = sphi 0, %s160
      %s164 = sphi 0, %s163
      %s180 = sphi 0, %s164
    $region4: #{tpu_custom_call.1} parent=1 // loop_header_branch
      %22 = sbr.rel (%p20) target = $region8
    $region5: #{tpu_custom_call.1} parent=1 // loop_body
      %s24 = ssub.s32 %s19, 1
      %s25 = ssub.s32 %s19, 2
      %s26 = sadd.s32 %s19, 1
      %s27 = ssub.s32 %s19, %s26
      %p28 = scmp.eq.s32.totalorder %s27, 0
      %s30 = sadd.s32 %s29, 1
      %s31 = scalar_select %p28, %s29, %s30
      %p34 = pneg %p28
      %p35 = scmp.eq.s32.totalorder %s19, 1
      %p36 = por %p34, %p35
      %p37 = scmp.ne.s32.totalorder %s29, %s32
      %p38 = scmp.eq.s32.totalorder %s19, 0
      %p39 = por %p37, %p38
      %p40 = scmp.ne.s32.totalorder %s29, %s32
      %p41 = scmp.eq.s32.totalorder %s24, 1
      %p42 = por %p40, %p41
      %p43 = scmp.ne.s32.totalorder %s32, %s33
      %p44 = scmp.eq.s32.totalorder %s24, 0
      %p45 = por %p43, %p44
      %p46 = scmp.ne.s32.totalorder %s32, %s33
      %p47 = scmp.eq.s32.totalorder %s25, 1
      %p48 = por %p46, %p47
      %p50 = scmp.ne.s32.totalorder %s33, %s49
      %p51 = scmp.eq.s32.totalorder %s25, 0
      %p52 = por %p50, %p51
      %s54 = sadd.s32 %s53, 1
      %p57 = scmp.eq.s32.totalorder %s19, 1
      %p58 = scmp.ne.s32.totalorder %s53, %s55
      %p59 = scmp.eq.s32.totalorder %s19, 0
      %p60 = por %p58, %p59
      %p61 = scmp.ne.s32.totalorder %s53, %s55
      %p62 = scmp.eq.s32.totalorder %s24, 1
      %p63 = por %p61, %p62
      %p64 = scmp.ne.s32.totalorder %s55, %s56
      %p65 = scmp.eq.s32.totalorder %s24, 0
      %p66 = por %p64, %p65
      %p67 = scmp.ne.s32.totalorder %s55, %s56
      %p68 = scmp.eq.s32.totalorder %s25, 1
      %p69 = por %p67, %p68
      %p71 = scmp.ne.s32.totalorder %s56, %s70
      %p72 = scmp.eq.s32.totalorder %s25, 0
      %p73 = por %p71, %p72
      %s75 = sadd.s32 %s74, 1
      %p78 = scmp.eq.s32.totalorder %s19, 1
      %p79 = scmp.ne.s32.totalorder %s74, %s76
      %p80 = scmp.eq.s32.totalorder %s19, 0
      %p81 = por %p79, %p80
      %p82 = scmp.ne.s32.totalorder %s74, %s76
      %p83 = scmp.eq.s32.totalorder %s24, 1
      %p84 = por %p82, %p83
      %p85 = scmp.ne.s32.totalorder %s76, %s77
      %p86 = scmp.eq.s32.totalorder %s24, 0
      %p87 = por %p85, %p86
      %p88 = scmp.ne.s32.totalorder %s76, %s77
      %p89 = scmp.eq.s32.totalorder %s25, 1
      %p90 = por %p88, %p89
      %p92 = scmp.ne.s32.totalorder %s77, %s91
      %p93 = scmp.eq.s32.totalorder %s25, 0
      %p94 = por %p92, %p93
      %s96 = sadd.s32 %s95, 1
      %p99 = scmp.eq.s32.totalorder %s19, 1
      %p100 = scmp.ne.s32.totalorder %s95, %s97
      %p101 = scmp.eq.s32.totalorder %s19, 0
      %p102 = por %p100, %p101
      %p103 = scmp.ne.s32.totalorder %s95, %s97
      %p104 = scmp.eq.s32.totalorder %s24, 1
      %p105 = por %p103, %p104
      %p106 = scmp.ne.s32.totalorder %s97, %s98
      %p107 = scmp.eq.s32.totalorder %s24, 0
      %p108 = por %p106, %p107
      %p109 = scmp.ne.s32.totalorder %s97, %s98
      %p110 = scmp.eq.s32.totalorder %s25, 1
      %p111 = por %p109, %p110
      %p113 = scmp.ne.s32.totalorder %s98, %s112
      %p114 = scmp.eq.s32.totalorder %s25, 0
      %p115 = por %p113, %p114
      %s117 = sadd.s32 %s116, 1
      %p120 = scmp.eq.s32.totalorder %s19, 1
      %p121 = scmp.ne.s32.totalorder %s116, %s118
      %p122 = scmp.eq.s32.totalorder %s19, 0
      %p123 = por %p121, %p122
      %p124 = scmp.ne.s32.totalorder %s116, %s118
      %p125 = scmp.eq.s32.totalorder %s24, 1
      %p126 = por %p124, %p125
      %p127 = scmp.ne.s32.totalorder %s118, %s119
      %p128 = scmp.eq.s32.totalorder %s24, 0
      %p129 = por %p127, %p128
      %p130 = scmp.ne.s32.totalorder %s118, %s119
      %p131 = scmp.eq.s32.totalorder %s25, 1
      %p132 = por %p130, %p131
      %p134 = scmp.ne.s32.totalorder %s119, %s133
      %p135 = scmp.eq.s32.totalorder %s25, 0
      %p136 = por %p134, %p135
      %s138 = sadd.s32 %s137, 1
      %p141 = scmp.eq.s32.totalorder %s19, 1
      %p142 = scmp.ne.s32.totalorder %s137, %s139
      %p143 = scmp.eq.s32.totalorder %s19, 0
      %p144 = por %p142, %p143
      %p145 = scmp.ne.s32.totalorder %s137, %s139
      %p146 = scmp.eq.s32.totalorder %s24, 1
      %p147 = por %p145, %p146
      %p148 = scmp.ne.s32.totalorder %s139, %s140
      %p149 = scmp.eq.s32.totalorder %s24, 0
      %p150 = por %p148, %p149
      %p151 = scmp.ne.s32.totalorder %s139, %s140
      %p152 = scmp.eq.s32.totalorder %s25, 1
      %p153 = por %p151, %p152
      %p155 = scmp.ne.s32.totalorder %s140, %s154
      %p156 = scmp.eq.s32.totalorder %s25, 0
      %p157 = por %p155, %p156
      %s158 = ssub.s32 %s19, %s26
      %p159 = scmp.eq.s32.totalorder %s158, 0
      %s161 = sadd.s32 %s160, 1
      %s162 = scalar_select %p159, %s160, %s161
      %p165 = pneg %p159
      %p166 = scmp.eq.s32.totalorder %s19, 1
      %p167 = por %p165, %p166
      %p168 = scmp.ne.s32.totalorder %s160, %s163
      %p169 = scmp.eq.s32.totalorder %s19, 0
      %p170 = por %p168, %p169
      %p171 = scmp.ne.s32.totalorder %s160, %s163
      %p172 = scmp.eq.s32.totalorder %s24, 1
      %p173 = por %p171, %p172
      %p174 = scmp.ne.s32.totalorder %s163, %s164
      %p175 = scmp.eq.s32.totalorder %s24, 0
      %p176 = por %p174, %p175
      %p177 = scmp.ne.s32.totalorder %s163, %s164
      %p178 = scmp.eq.s32.totalorder %s25, 1
      %p179 = por %p177, %p178
      %p181 = scmp.ne.s32.totalorder %s164, %s180
      %p182 = scmp.eq.s32.totalorder %s25, 0
      %p183 = por %p181, %p182
      %p184 = scmp.le.s32.totalorder 1, %s19
      %p185 = scmp.lt.s32.totalorder %s19, 3
      %p186 = pnand %p184, %p185
      %p187 = pneg %p186
      // Predicated region
      $region9: #{tpu_custom_call.1} parent=5 // pred_check
        _
      $region10: #{tpu_custom_call.1} parent=5 // pred_check_branch
        %189 = sbr.rel (%p186) target = $region12
      $region11: #{tpu_custom_call.1} parent=5 // pred_region
        %s190 = ssub.s32 %s19, 1
        // Predicated region
        $region13: #{tpu_custom_call.1} parent=11 // pred_check
          %p191 = pneg %p66
        $region14: #{tpu_custom_call.1} parent=11 // pred_check_branch
          %193 = sbr.rel (%p191) target = $region16
        $region15: #{tpu_custom_call.1} parent=11 // pred_region
          %195 = vsyncadd [#allocation6], 0
          %s196 = sshll.u32 %s1, 4
          %s197 = int_to_ptr.hbm [resolvable:$true] %s196
          %s198 = sshll.u32 [#allocation5], 4
          %s199 = int_to_ptr.vmem [resolvable:$true] %s198
          %204 = dma.hbm_to_vmem [thread:$0]  %s197, 512, %s199, [#allocation6], 128, 128, 8
        $region16: #{tpu_custom_call.1} parent=11 // pred_fallthru
          _
        // Predicated region
        $region17: #{tpu_custom_call.1} parent=11 // pred_check
          %p205 = pneg %p87
        $region18: #{tpu_custom_call.1} parent=11 // pred_check_branch
          %207 = sbr.rel (%p205) target = $region20
        $region19: #{tpu_custom_call.1} parent=11 // pred_region
          _
        $region20: #{tpu_custom_call.1} parent=11 // pred_fallthru
          _
        // Predicated region
        $region21: #{tpu_custom_call.1} parent=11 // pred_check
          %p208 = pneg %p108
        $region22: #{tpu_custom_call.1} parent=11 // pred_check_branch
          %210 = sbr.rel (%p208) target = $region24
        $region23: #{tpu_custom_call.1} parent=11 // pred_region
          %212 = vsyncadd [#allocation6], 0
          %s213 = sshll.u32 %s3, 4
          %s214 = int_to_ptr.hbm [resolvable:$true] %s213
          %s215 = sshll.u32 [#allocation7], 4
          %s216 = int_to_ptr.vmem [resolvable:$true] %s215
          %221 = dma.hbm_to_vmem [thread:$0]  %s214, 512, %s216, [#allocation6], 128, 128, 8
        $region24: #{tpu_custom_call.1} parent=11 // pred_fallthru
          _
        // Predicated region
        $region25: #{tpu_custom_call.1} parent=11 // pred_check
          %p222 = pneg %p129
        $region26: #{tpu_custom_call.1} parent=11 // pred_check_branch
          %224 = sbr.rel (%p222) target = $region28
        $region27: #{tpu_custom_call.1} parent=11 // pred_region
          _
        $region28: #{tpu_custom_call.1} parent=11 // pred_fallthru
          _
        // Predicated region
        $region29: #{tpu_custom_call.1} parent=11 // pred_check
          %p225 = pneg %p150
        $region30: #{tpu_custom_call.1} parent=11 // pred_check_branch
          %227 = sbr.rel (%p225) target = $region32
        $region31: #{tpu_custom_call.1} parent=11 // pred_region
          _
        $region32: #{tpu_custom_call.1} parent=11 // pred_fallthru
          _
      $region12: #{tpu_custom_call.1} parent=5 // pred_fallthru
        _
      %p228 = scmp.lt.s32.totalorder %s19, 2
      // Predicated region
      $region33: #{tpu_custom_call.1} parent=5 // pred_check
        %p229 = pneg %p228
      $region34: #{tpu_custom_call.1} parent=5 // pred_check_branch
        %231 = sbr.rel (%p229) target = $region36
      $region35: #{tpu_custom_call.1} parent=5 // pred_region
        // Predicated region
        $region37: #{tpu_custom_call.1} parent=35 // pred_check
          %p232 = pneg %p39
        $region38: #{tpu_custom_call.1} parent=35 // pred_check_branch
          %234 = sbr.rel (%p232) target = $region40
        $region39: #{tpu_custom_call.1} parent=35 // pred_region
          %s235 = sand.u32 %s29, 1
          %s236 = scalar_lea.sflag [#allocation3], %s235
          %s237 = sand.u32 %s29, 1
          %s238 = smul.addr %s237, 8
          %s239 = scalar_lea.vmem [#allocation2], %s238
          %241 = vsyncadd %s236, 0
          %s242 = smul.addr %s19, 8
          %s243 = scalar_lea.hbm %s0, %s242
          %s245 = sshll.u32 %s243, 4
          %s246 = int_to_ptr.hbm [resolvable:$true] %s245
          %s247 = sshll.u32 %s239, 4
          %s248 = int_to_ptr.vmem [resolvable:$true] %s247
          %250 = dma.hbm_to_vmem [thread:$0]  %s246, 128, %s248, %s236
        $region40: #{tpu_custom_call.1} parent=35 // pred_fallthru
          _
      $region36: #{tpu_custom_call.1} parent=5 // pred_fallthru
        _
      %p251 = scmp.le.s32.totalorder 1, %s19
      %p252 = scmp.lt.s32.totalorder %s19, 3
      %p253 = pnand %p251, %p252
      %p254 = pneg %p253
      // Predicated region
      $region41: #{tpu_custom_call.1} parent=5 // pred_check
        _
      $region42: #{tpu_custom_call.1} parent=5 // pred_check_branch
        %256 = sbr.rel (%p253) target = $region44
      $region43: #{tpu_custom_call.1} parent=5 // pred_region
        %s257 = ssub.s32 %s19, 1
        %s258 = sand.u32 %s32, 1
        %s259 = scalar_lea.sflag [#allocation3], %s258
        %s260 = sand.u32 %s32, 1
        %s261 = smul.addr %s260, 8
        %s262 = scalar_lea.vmem [#allocation2], %s261
        // Predicated region
        $region45: #{tpu_custom_call.1} parent=43 // pred_check
          %p263 = pneg %p45
        $region46: #{tpu_custom_call.1} parent=43 // pred_check_branch
          %265 = sbr.rel (%p263) target = $region48
        $region47: #{tpu_custom_call.1} parent=43 // pred_region
          %267 = dma.done %s259, 128
        $region48: #{tpu_custom_call.1} parent=43 // pred_fallthru
          _
        // Predicated region
        $region49: #{tpu_custom_call.1} parent=43 // pred_check
          %p268 = pneg %p66
        $region50: #{tpu_custom_call.1} parent=43 // pred_check_branch
          %270 = sbr.rel (%p268) target = $region52
        $region51: #{tpu_custom_call.1} parent=43 // pred_region
          %272 = dma.done [#allocation6], 512
        $region52: #{tpu_custom_call.1} parent=43 // pred_fallthru
          _
        // Predicated region
        $region53: #{tpu_custom_call.1} parent=43 // pred_check
          %p273 = pneg %p108
        $region54: #{tpu_custom_call.1} parent=43 // pred_check_branch
          %275 = sbr.rel (%p273) target = $region56
        $region55: #{tpu_custom_call.1} parent=43 // pred_region
          %277 = dma.done [#allocation6], 512
        $region56: #{tpu_custom_call.1} parent=43 // pred_fallthru
          _
        %s278 = sand.u32 %s32, 1
        %s279 = scalar_lea.sflag [#allocation3], %s278
        %s280 = sand.u32 %s32, 1
        %s281 = smul.addr %s280, 8
        %s282 = scalar_lea.vmem [#allocation2], %s281
        %p283 = pneg %p45
        %p284 = pneg %p42
        %p285 = pneg %p66
        %p286 = pneg %p63
        %p287 = pneg %p87
        %p288 = pneg %p84
        %p289 = pneg %p108
        %p290 = pneg %p105
        %p291 = pneg %p129
        %p292 = pneg %p126
        %p293 = pneg %p150
        %p294 = pneg %p147
        %p295 = pneg %p176
        %p296 = pneg %p173
        %s297 = sand.u32 %s163, 1
        %s298 = scalar_lea.sflag [#allocation4], %s297
        %s299 = sand.u32 %s163, 1
        %s300 = smul.addr %s299, 8
        %s301 = scalar_lea.vmem [#allocation8], %s300
        %v302 = vld [vmem:[%s262] sm:$0xff]
        %v303 = vld [vmem:[#allocation5] sm:$0xff]
        %v304 = vld [vmem:[#allocation5 + $0x8] sm:$0xff]
        %v305 = vld [vmem:[#allocation5 + $0x10] sm:$0xff]
        %v306 = vld [vmem:[#allocation5 + $0x18] sm:$0xff]
        %v307 = vld [vmem:[%s2] sm:$0x1]
        %v309 = vperm.slane %v307, 0
        %vm311 = vcmask 261120
        %v313 = vsel %vm311, %v302, 0
        %315 = vmatpush.msra.mxu0 0.0
        %316 = vmatpush.msra.mxu0 0.0
        %317 = vmatpush.msra.mxu0 0.0
        %318 = vmatpush.msra.mxu0 0.0
        %319 = vmatpush.msra.mxu0 0.0
        %320 = vmatpush.msra.mxu0 0.0
        %321 = vmatpush.msra.mxu0 0.0
        %322 = vmatpush.msra.mxu0 0.0
        %323 = vmatpush.msra.mxu0 0.0
        %324 = vmatpush.msra.mxu0 0.0
        %325 = vmatpush.msra.mxu0 0.0
        %326 = vmatpush.msra.mxu0 0.0
        %327 = vmatpush.msra.mxu0 %v306
        %328 = vmatpush.msra.mxu0 %v305
        %329 = vmatpush.msra.mxu0 %v304
        %330 = vmatpush.msra.mxu0 %v303
        %331 = vmatmul.f32.gmra.mxu0 %v313
        %v332 = vpop.f32.mrf.mxu0
        %v333 = vadd.f32 %v309, %v332
        %334 = vdwg.mxu0
        %v335 = vmax.f32 %v333, 0.0
        %v336 = vld [vmem:[#allocation7] sm:$0xff]
        %v337 = vld [vmem:[#allocation7 + $0x8] sm:$0xff]
        %v338 = vld [vmem:[#allocation7 + $0x10] sm:$0xff]
        %v339 = vld [vmem:[#allocation7 + $0x18] sm:$0xff]
        %v340 = vld [vmem:[%s4] sm:$0x1]
        %v342 = vperm.slane %v340, 0
        %v345 = vsel %vm311, %v335, 0
        %347 = vmatpush.msra.mxu0 0.0
        %348 = vmatpush.msra.mxu0 0.0
        %349 = vmatpush.msra.mxu0 0.0
        %350 = vmatpush.msra.mxu0 0.0
        %351 = vmatpush.msra.mxu0 0.0
        %352 = vmatpush.msra.mxu0 0.0
        %353 = vmatpush.msra.mxu0 0.0
        %354 = vmatpush.msra.mxu0 0.0
        %355 = vmatpush.msra.mxu0 0.0
        %356 = vmatpush.msra.mxu0 0.0
        %357 = vmatpush.msra.mxu0 0.0
        %358 = vmatpush.msra.mxu0 0.0
        %359 = vmatpush.msra.mxu0 %v339
        %360 = vmatpush.msra.mxu0 %v338
        %361 = vmatpush.msra.mxu0 %v337
        %362 = vmatpush.msra.mxu0 %v336
        %363 = vmatmul.f32.gmra.mxu0 %v345
        %v364 = vpop.f32.mrf.mxu0
        %v365 = vadd.f32 %v342, %v364
        %366 = vdwg.mxu0
        %v367 = vsub.f32 0.0, %v365
        %v368 = vmul.f32 %v367, 1.442695
        %v369 = vpow.pop %v368
        %v370 = vadd.f32 %v369, 1.0
        %v371 = vrcp.pop %v370
        %v372 = vmul.f32 %v370, %v371
        %v373 = vsub.f32 1.0, %v372
        %v374 = vmul.f32 %v371, %v373
        %v375 = vadd.f32 %v371, %v374
        %vm376 = vweird.f32 %v370
        %vm377 = vweird.f32 %v371
        %vm378 = vmor %vm376, %vm377
        %v379 = vsel %vm378, %v371, %v375
        %v380 = vand.u32 2147483647, %v370
        %vm381 = vcmp.eq.f32.partialorder %v380, 8.507059e+37
        %v382 = vand.u32 %v370, 2147483648
        %v383 = vor.u32 1.1754944e-38, %v382
        %v384 = vsel %vm381, %v383, %v379
        %v385 = vmul.f32 1.0, %v384
        %v386 = vld [vmem:[%s5] sm:$0x1]
        %v388 = vperm.slane %v386, 0
        %v390 = vmul.f32 %v385, %v388
        %vm391 = vcmask 728064
        %392 = vst.msk [vmem:[%s301] sm:$0xff] %vm391, %v390
        %s393 = sand.u32 %s163, 1
        %s394 = scalar_lea.sflag [#allocation4], %s393
        %s395 = sand.u32 %s163, 1
        %s396 = smul.addr %s395, 8
        %s397 = scalar_lea.vmem [#allocation8], %s396
        // Predicated region
        $region57: #{tpu_custom_call.1} parent=43 // pred_check
          %p398 = pneg %p173
        $region58: #{tpu_custom_call.1} parent=43 // pred_check_branch
          %400 = sbr.rel (%p398) target = $region60
        $region59: #{tpu_custom_call.1} parent=43 // pred_region
          %402 = vsyncadd %s394, 0
          %s403 = smul.addr %s24, 8
          %s404 = scalar_lea.hbm %s6, %s403
          %s406 = sshll.u32 %s397, 4
          %s407 = int_to_ptr.vmem [resolvable:$true] %s406
          %s408 = sshll.u32 %s404, 4
          %s409 = int_to_ptr.hbm [resolvable:$true] %s408
          %411 = dma.vmem_to_hbm [thread:$0]  %s407, 128, %s409, %s394
        $region60: #{tpu_custom_call.1} parent=43 // pred_fallthru
          _
      $region44: #{tpu_custom_call.1} parent=5 // pred_fallthru
        _
      %p412 = scmp.le.s32.totalorder 2, %s19
      // Predicated region
      $region61: #{tpu_custom_call.1} parent=5 // pred_check
        %p413 = pneg %p412
      $region62: #{tpu_custom_call.1} parent=5 // pred_check_branch
        %415 = sbr.rel (%p413) target = $region64
      $region63: #{tpu_custom_call.1} parent=5 // pred_region
        %s416 = ssub.s32 %s19, 2
        // Predicated region
        $region65: #{tpu_custom_call.1} parent=63 // pred_check
          %p417 = pneg %p179
        $region66: #{tpu_custom_call.1} parent=63 // pred_check_branch
          %419 = sbr.rel (%p417) target = $region68
        $region67: #{tpu_custom_call.1} parent=63 // pred_region
          %s420 = sand.u32 %s164, 1
          %s421 = scalar_lea.sflag [#allocation4], %s420
          %s422 = sand.u32 %s164, 1
          %s423 = smul.addr %s422, 8
          %s424 = scalar_lea.vmem [#allocation8], %s423
          %426 = dma.done %s421, 128
        $region68: #{tpu_custom_call.1} parent=63 // pred_fallthru
          _
      $region64: #{tpu_custom_call.1} parent=5 // pred_fallthru
        _
    $region6: #{tpu_custom_call.1} parent=1 // loop_footer
      %s23 = sadd.s32 1, %s19
    $region7: #{tpu_custom_call.1} parent=1 // loop_footer_branch
      %18 = sbr.rel target = $region3
    $region8: #{tpu_custom_call.1} parent=1 // loop_exit
      _
    %427 = vsyncpa [#allocation3], 1
    %s428 = scalar_lea.sflag [#allocation3], 1
    %429 = vsyncpa %s428, 1
    %430 = vsyncpa [#allocation6], 1
    %431 = vsyncpa [#allocation4], 1
    %s432 = scalar_lea.sflag [#allocation4], 1
    %433 = vsyncpa %s432, 1

</llo_original>
